<compile_context>
chip_gen: v6e
topology: v6e:2x2x1
jax: 0.10.0
libtpu: 0.0.40
codegen_flags: <defaults>
</compile_context>

<pallas_src>
import functools

import jax
import jax.numpy as jnp
from jax import lax
from jax.experimental import pallas as pl
from jax.experimental.pallas import tpu as pltpu


# ------------------------------ small helpers --------------------------------
def _round_up(x, m):
    return ((x + m - 1) // m) * m


def _largest_divisor_leq(n, cap):
    cap = max(1, min(n, cap))
    for d in range(cap, 0, -1):
        if n % d == 0:
            return d
    return 1


def _vmem_capacity_bytes():
    # Generation-aware budget: 64 MiB physical VMEM on v7x, 128 MiB on v5e/v6e.
    try:
        return int(pltpu.get_tpu_info().vmem_capacity_bytes)
    except Exception:
        return 64 * 1024 * 1024            # conservative (v7x) fallback


def _auto_hwp_block(hwp, batch_block, gc, g, kp, budget):
    lane_gc = _round_up(gc, 128)            # lane padding when gc < 128
    w_bytes = _round_up(gc, 8) * (g * kp) * 2 * 2
    out_bytes = _round_up(batch_block, 8) * kp * 4 * 2

    def footprint(hwp_blk):
        feat_bytes = batch_block * hwp_blk * lane_gc * 2 * 2       # bf16, dbl-buf
        chunk = _largest_divisor_leq(hwp_blk, max(8, 256 // max(1, batch_block)))
        cm_bytes = 2 * batch_block * chunk * g * kp * 4            # f32 cm + temps
        return feat_bytes + w_bytes + out_bytes + cm_bytes + (2 << 20)

    cands = [d for d in range(hwp, 0, -1)
             if hwp % d == 0 and (d % 16 == 0 or d == hwp)]
    for d in cands:
        if footprint(d) <= budget:
            return d
    return cands[-1]


# ----------------------------- Pallas kernel --------------------------------
def _localizer_head_kernel(f_ref, w_ref, o_ref, *, g, kp, chunk):
    # f_ref : (B_blk, HWp_blk, g*C)  bf16 packed feature tile (lane-dense)
    # w_ref : (g*C, g*Kp)            bf16 block-diagonal 1x1-conv weight
    # o_ref : (B_blk, Kp)            f32 running max (resident across hw axis)
    hw = pl.program_id(1)

    @pl.when(hw == 0)
    def _():
        o_ref[...] = jnp.full(o_ref.shape, -jnp.inf, o_ref.dtype)

    b_blk, hwp_blk, gc = f_ref.shape
    w = w_ref[...]
    n_chunks = hwp_blk // chunk

    def chunk_max(f):
        # f: (b_blk, rows, gc) bf16 -> one fused-batch MXU matmul, f32 accumulate.
        rows = f.shape[1]
        cm = jnp.dot(f.reshape(b_blk * rows, gc), w,
                     preferred_element_type=jnp.float32)   # (b*rows, g*Kp)
        # Fold the g packed pixels: static 128-lane column slices.
        cmax = cm[:, :kp]
        for k in range(1, g):
            cmax = jnp.maximum(cmax, cm[:, k * kp:(k + 1) * kp])
        # Partial AdaptiveMaxPool2d((1,1)): max over the rows of this chunk.
        return cmax.reshape(b_blk, rows, kp).max(axis=1)    # (b_blk, Kp)

    if n_chunks == 1:
        m = jnp.maximum(o_ref[...], chunk_max(f_ref[...]))
    else:
        def body(i, m):
            start = pl.multiple_of(i * chunk, chunk)
            return jnp.maximum(m, chunk_max(f_ref[:, pl.ds(start, chunk), :]))
        m = lax.fori_loop(0, n_chunks, body, o_ref[...], unroll=(n_chunks <= 8))

    o_ref[...] = m


# ------------------------------- wrapper -------------------------------------
def max_pooled_localizer_head(feats_flat, weight, bias, *, hw_block=None,
                              batch_block=None):
    """feats_flat: (N, HW, C) bf16 channels-last; weight: (C, K); bias: (1, K)."""
    N, HW, C = feats_flat.shape
    K = weight.shape[1]
    Kp = _round_up(K, 128)                 # lane-dense class dimension

    # Pixel packing factor: g consecutive pixels share one lane-dense row.
    g = 1
    if C < 128 and 128 % C == 0:
        g = 128 // C
        while g > 1 and HW % g:
            g //= 2
    gc = g * C
    hwp = HW // g

    if batch_block is None:
        # >=2 parallel batch programs when the batch is big enough (v7x megacore);
        # small batches stay whole (block dim == full array dim is always legal).
        batch_block = N // 2 if (N >= 16 and N % 16 == 0) else N
    assert N % batch_block == 0, "batch_block must divide N"
    assert batch_block % 8 == 0 or batch_block == N

    vmem_cap = _vmem_capacity_bytes()
    vmem_budget = vmem_cap * 3 // 4

    if hw_block is None:
        hwp_blk = _auto_hwp_block(hwp, batch_block, gc, g, Kp, vmem_budget)
    else:
        assert hw_block % g == 0, "hw_block (pixels) must be a multiple of the packing factor"
        hwp_blk = hw_block // g
        assert hwp % hwp_blk == 0, "hw_block must divide H*W"
        assert hwp_blk % 8 == 0 or hwp_blk == hwp

    # In-kernel chunk: keep the f32 class-map intermediate to ~<=256 rows.
    chunk = _largest_divisor_leq(hwp_blk, max(8, 256 // max(1, batch_block)))

    # Weights: zero-pad classes to Kp and build the block-diagonal packed weight.
    w_pad = jnp.zeros((C, Kp), jnp.float32).at[:, :K].set(weight.astype(jnp.float32))
    w_blk = jnp.zeros((gc, g * Kp), jnp.float32)
    for k in range(g):
        w_blk = w_blk.at[k * C:(k + 1) * C, k * Kp:(k + 1) * Kp].set(w_pad)
    w_blk = w_blk.astype(jnp.bfloat16)

    # Free reshape: pack g consecutive pixels' channels into the lane dimension.
    feats_packed = feats_flat.astype(jnp.bfloat16).reshape(N, hwp, gc)

    grid = (N // batch_block, hwp // hwp_blk)
    out = pl.pallas_call(
        functools.partial(_localizer_head_kernel, g=g, kp=Kp, chunk=chunk),
        out_shape=jax.ShapeDtypeStruct((N, Kp), jnp.float32),
        grid_spec=pltpu.PrefetchScalarGridSpec(
            num_scalar_prefetch=0,
            grid=grid,
            in_specs=[
                pl.BlockSpec((batch_block, hwp_blk, gc), lambda b, h: (b, h, 0)),
                pl.BlockSpec((gc, g * Kp), lambda b, h: (0, 0)),
            ],
            out_specs=pl.BlockSpec((batch_block, Kp), lambda b, h: (b, 0)),
        ),
        compiler_params=pltpu.CompilerParams(
            # batch axis parallel (megacore); spatial axis is the running-max
            # reduction (resident output block), so it is "arbitrary" and last.
            dimension_semantics=("parallel", "arbitrary"),
            vmem_limit_bytes=int(vmem_budget),
        ),
    )(feats_packed, w_blk)

    # Flatten() of the pooled (N, K, 1, 1); bias after the max is exact.
    return out[:, :K] + bias.astype(jnp.float32)


# ------------------------- synthetic base_cnn (glue) -------------------------
def synthetic_base_cnn_nhwc(x_nchw, conv_w, conv_b):
    """Stand-in for base_cnn: 3x3 conv + ReLU. NCHW in, bf16 NHWC out (no extra
    f32 feature-map HBM pass before the Pallas head)."""
    y = lax.conv_general_dilated(
        x_nchw.astype(jnp.bfloat16), conv_w.astype(jnp.bfloat16),
        window_strides=(1, 1), padding=((1, 1), (1, 1)),
        dimension_numbers=("NCHW", "OIHW", "NHWC"),    # emit channels-last
        preferred_element_type=jnp.bfloat16,
    )
    y = y + conv_b.astype(jnp.bfloat16)[None, None, None, :]
    return jnp.maximum(y, jnp.bfloat16(0))             # (N, H, W, C) bf16


# ------------------------------ full forward ---------------------------------
def max_pooled_localizer_forward(x_nchw, params, *, hw_block=None):
    feats = synthetic_base_cnn_nhwc(x_nchw, params["base_w"], params["base_b"])
    N, H, W, C = feats.shape
    feats_flat = feats.reshape(N, H * W, C)             # free view, no transpose
    return max_pooled_localizer_head(
        feats_flat, params["final_w"], params["final_b"], hw_block=hw_block)


# --------------------------------- main --------------------------------------
if __name__ == "__main__":
    key = jax.random.PRNGKey(0)
    k1, k2, k3, k4, k5 = jax.random.split(key, 5)

    N, C_in, H_in, W_in = 2, 3, 16, 16
    n_hidden = 32          # n_hidden_filters == get_num_output_features(base_cnn)
    n_classes = 8

    x = jax.random.normal(k1, (N, C_in, H_in, W_in), dtype=jnp.float32)

    params = {
        # base_cnn stand-in: 3x3 conv C_in -> n_hidden
        "base_w": 0.1 * jax.random.normal(k2, (n_hidden, C_in, 3, 3), jnp.float32),
        "base_b": 0.1 * jax.random.normal(k3, (n_hidden,), jnp.float32),
        # final_conv_block: Conv2d(n_hidden, n_classes, kernel_size=1, bias=True)
        # torch weight (n_classes, n_hidden, 1, 1) stored as (n_hidden, n_classes)
        "final_w": 0.1 * jax.random.normal(k4, (n_hidden, n_classes), jnp.float32),
        "final_b": 0.1 * jax.random.normal(k5, (1, n_classes), jnp.float32),
    }

    # hw_block=128 pixels -> packed tile of 32 lane-dense rows, grid=(1, 2):
    # exercises the running-max accumulation across spatial grid steps.
    fwd = jax.jit(lambda xx, pp: max_pooled_localizer_forward(xx, pp, hw_block=128))
    scores = jax.block_until_ready(fwd(x, params))
    assert scores.shape == (N, n_classes)

    # Pure-JAX reference of the kernel-implemented head (same bf16 feature map
    # and weights, f32 accumulation, bias after max).
    feats = synthetic_base_cnn_nhwc(x, params["base_w"], params["base_b"])
    f16 = feats.reshape(N, -1, n_hidden)
    w16 = params["final_w"].astype(jnp.bfloat16)
    ref_maps = jnp.einsum("npc,ck->npk", f16, w16,
                          preferred_element_type=jnp.float32)
    ref_scores = jnp.max(ref_maps, axis=1) + params["final_b"]
    assert jnp.allclose(scores, ref_scores, atol=2e-3, rtol=2e-3), (
        float(jnp.max(jnp.abs(scores - ref_scores))))

    print("KERNEL_OK")
</pallas_src>

<mosaic_0001>
module attributes {stable_mosaic.version = 11 : i64} {
  func.func @_localizer_head_kernel(%arg0: i32, %arg1: i32, %arg2: memref<2x32x128xbf16, #tpu.memory_space<vmem>>, %arg3: memref<128x512xbf16, #tpu.memory_space<vmem>>, %arg4: memref<2x128xf32, #tpu.memory_space<vmem>>) attributes {dimension_semantics = [#tpu.dimension_semantics<parallel>, #tpu.dimension_semantics<arbitrary>], iteration_bounds = array<i64: 1, 2>, scalar_prefetch = 0 : i64, scratch_operands = 0 : i64, tpu.core_type = #tpu.core_type<tc>, window_params = [{transform_indices = @transform_0, window_bounds = array<i64: 2, 32, 128>}, {pipeline_mode = #tpu.pipeline_mode<synchronous>, transform_indices = @transform_1, window_bounds = array<i64: 128, 512>}, {transform_indices = @transform_2, window_bounds = array<i64: 2, 128>}]} {
    %c0_i32 = arith.constant 0 : i32
    %0 = arith.cmpi eq, %arg1, %c0_i32 : i32
    %1 = arith.extui %0 : i1 to i32
    %c0_i32_0 = arith.constant 0 : i32
    %2 = arith.cmpi ne, %1, %c0_i32_0 : i32
    scf.if %2 {
      %cst_10 = arith.constant 0xFF800000 : f32
      %19 = vector.broadcast %cst_10 : f32 to vector<2x128xf32>
      %c0_11 = arith.constant 0 : index
      %c0_12 = arith.constant 0 : index
      %20 = vector.load %arg4[%c0_11, %c0_12] : memref<2x128xf32, #tpu.memory_space<vmem>>, vector<2x128xf32>
      tpu.vector_store %arg4[%c0_11, %c0_12], %19 {strides = array<i32>} : memref<2x128xf32, #tpu.memory_space<vmem>>, vector<2x128xf32>,
    } else {
    }
    %c0 = arith.constant 0 : index
    %c0_1 = arith.constant 0 : index
    %3 = vector.load %arg3[%c0, %c0_1] : memref<128x512xbf16, #tpu.memory_space<vmem>>, vector<128x512xbf16>
    %c0_2 = arith.constant 0 : index
    %c0_3 = arith.constant 0 : index
    %4 = vector.load %arg4[%c0_2, %c0_3] : memref<2x128xf32, #tpu.memory_space<vmem>>, vector<2x128xf32>
    %c0_4 = arith.constant 0 : index
    %c0_5 = arith.constant 0 : index
    %c0_6 = arith.constant 0 : index
    %5 = vector.load %arg2[%c0_4, %c0_5, %c0_6] : memref<2x32x128xbf16, #tpu.memory_space<vmem>>, vector<2x32x128xbf16>
    %6 = vector.shape_cast %5 : vector<2x32x128xbf16> to vector<64x128xbf16>
    %cst = arith.constant dense<0.000000e+00> : vector<64x512xf32>
    %7 = tpu.matmul %6, %3, %cst {dimension_numbers = #tpu.dot_dimension_numbers<[1], [0], [0], [1], [0, 0, 1, 1], [], []>} : vector<64x128xbf16>, vector<128x512xbf16>, vector<64x512xf32> -> vector<64x512xf32>
    %8 = vector.extract_strided_slice %7 {offsets = [0, 0], sizes = [64, 128], strides = [1, 1]} : vector<64x512xf32> to vector<64x128xf32>
    %9 = vector.extract_strided_slice %7 {offsets = [0, 128], sizes = [64, 128], strides = [1, 1]} : vector<64x512xf32> to vector<64x128xf32>
    %10 = arith.maximumf %8, %9 : vector<64x128xf32>
    %11 = vector.extract_strided_slice %7 {offsets = [0, 256], sizes = [64, 128], strides = [1, 1]} : vector<64x512xf32> to vector<64x128xf32>
    %12 = arith.maximumf %10, %11 : vector<64x128xf32>
    %13 = vector.extract_strided_slice %7 {offsets = [0, 384], sizes = [64, 128], strides = [1, 1]} : vector<64x512xf32> to vector<64x128xf32>
    %14 = arith.maximumf %12, %13 : vector<64x128xf32>
    %15 = vector.shape_cast %14 : vector<64x128xf32> to vector<2x32x128xf32>
    %cst_7 = arith.constant dense<0xFF800000> : vector<2x128xf32>
    %16 = vector.multi_reduction <maximumf>, %15, %cst_7 [1] : vector<2x32x128xf32> to vector<2x128xf32>
    %17 = arith.maximumf %4, %16 : vector<2x128xf32>
    %c0_8 = arith.constant 0 : index
    %c0_9 = arith.constant 0 : index
    %18 = vector.load %arg4[%c0_8, %c0_9] : memref<2x128xf32, #tpu.memory_space<vmem>>, vector<2x128xf32>
    tpu.vector_store %arg4[%c0_8, %c0_9], %17 {strides = array<i32>} : memref<2x128xf32, #tpu.memory_space<vmem>>, vector<2x128xf32>,
    return
  }
  func.func @transform_0(%arg0: i32, %arg1: i32) -> (i32, i32, i32) {
    %c0_i32 = arith.constant 0 : i32
    %c0_i32_0 = arith.constant 0 : i32
    return %arg0, %arg1, %c0_i32 : i32, i32, i32
  }
  func.func @transform_1(%arg0: i32, %arg1: i32) -> (i32, i32) {
    %c0_i32 = arith.constant 0 : i32
    %c0_i32_0 = arith.constant 0 : i32
    %c0_i32_1 = arith.constant 0 : i32
    return %c0_i32, %c0_i32_0 : i32, i32
  }
  func.func @transform_2(%arg0: i32, %arg1: i32) -> (i32, i32) {
    %c0_i32 = arith.constant 0 : i32
    %c0_i32_0 = arith.constant 0 : i32
    return %arg0, %c0_i32 : i32, i32
  }
}

</mosaic_0001>

<llo_original>
// kernel: _lambda_.1
$region0: #{_lambda_.1}
  #allocation0 [shape = 'u32[]', space=smem, size = 0x4, offset = 0x4, fixed_abs, tag = 'smem constant byte address 0x4 - core index']
  #allocation1 [shape = 'u32[144,128]{1,0:T(1,128)}', space=vmem, size = 0x12000, scoped, tag = 'internal scratch']
  %s0 = inlined_call_operand.vmem [shape: bf16[2,64,128], index: 0, kind: input, shape index: {}]
  %s1 = inlined_call_operand.vmem [shape: bf16[128,512], index: 1, kind: input, shape index: {}]
  %s2 = inlined_call_operand.vmem [shape: f32[2,128], index: 2, kind: output, shape index: {}]
  %s3 = sld [smem:[#allocation0]]
  $region86: #{_lambda_.1} parent=0
    _
  %s5 = ssub.s32 1, %s3
  %s6 = scalar_select 0, %s5, %s3
  $region1: #{_lambda_.1} parent=0
    #allocation2 [shape = 'u8[32768]{0}', space=vmem, size = 0x8000, scoped, tag = 'input window, operand 0']
    loop: start=0, step=1, limit=4
    $region2: #{_lambda_.1} parent=1 // loop_pre_header
      _
    $region3: #{_lambda_.1} parent=1 // loop_header
      %s8 = sphi 0, %s12
      %p9 = scmp.ge.s32.totalorder %s8, 4
      %s15 = sphi 0, %s27
      %s16 = sphi 0, %s23
      %s17 = sphi 0, %s15
      %s18 = sphi 0, %s16
      %s19 = sphi 0, %s17
      %s20 = sphi 0, %s18
      %s32 = sphi 0, %s34
      %s35 = sphi 0, %s32
      %s36 = sphi 0, %s35
      %s52 = sphi 0, %s36
      %s56 = sphi 0, %s56
      %s58 = sphi 0, %s56
      %s59 = sphi 0, %s58
      %s73 = sphi 0, %s59
      %s79 = sphi 0, %s81
      %s82 = sphi 0, %s79
      %s83 = sphi 0, %s82
      %s99 = sphi 0, %s83
    $region4: #{_lambda_.1} parent=1 // loop_header_branch
      %11 = sbr.rel (%p9) target = $region8
    $region5: #{_lambda_.1} parent=1 // loop_body
      %s13 = ssub.s32 %s8, 1
      %s14 = ssub.s32 %s8, 2
      %s21 = sadd.s32 1, %s16
      %p22 = scmp.ge.s32.totalorder %s21, 2
      %s23 = scalar_select %p22, 0, %s21
      %s24 = sadd.s32 1, %s15
      %s25 = scalar_select %p22, %s24, %s15
      %p26 = scmp.ge.s32.totalorder %s25, 1
      %s27 = scalar_select %p26, 0, %s25
      %s28 = ssub.s32 %s15, %s27
      %s29 = ssub.s32 %s16, %s23
      %s30 = sor.u32 %s28, %s29
      %p31 = scmp.eq.s32.totalorder %s30, 0
      %s33 = sadd.s32 %s32, 1
      %s34 = scalar_select %p31, %s32, %s33
      %p37 = pneg %p31
      %p38 = scmp.eq.s32.totalorder %s8, 1
      %p39 = por %p37, %p38
      %p40 = scmp.ne.s32.totalorder %s32, %s35
      %p41 = scmp.eq.s32.totalorder %s8, 0
      %p42 = por %p40, %p41
      %p43 = scmp.ne.s32.totalorder %s32, %s35
      %p44 = scmp.eq.s32.totalorder %s13, 1
      %p45 = por %p43, %p44
      %p46 = scmp.ne.s32.totalorder %s35, %s36
      %p47 = scmp.eq.s32.totalorder %s13, 0
      %p48 = por %p46, %p47
      %p49 = scmp.ne.s32.totalorder %s35, %s36
      %p50 = scmp.eq.s32.totalorder %s14, 1
      %p51 = por %p49, %p50
      %p53 = scmp.ne.s32.totalorder %s36, %s52
      %p54 = scmp.eq.s32.totalorder %s14, 0
      %p55 = por %p53, %p54
      %s57 = sadd.s32 %s56, 1
      %p60 = scmp.eq.s32.totalorder %s8, 1
      %p61 = scmp.ne.s32.totalorder %s56, %s58
      %p62 = scmp.eq.s32.totalorder %s8, 0
      %p63 = por %p61, %p62
      %p64 = scmp.ne.s32.totalorder %s56, %s58
      %p65 = scmp.eq.s32.totalorder %s13, 1
      %p66 = por %p64, %p65
      %p67 = scmp.ne.s32.totalorder %s58, %s59
      %p68 = scmp.eq.s32.totalorder %s13, 0
      %p69 = por %p67, %p68
      %p70 = scmp.ne.s32.totalorder %s58, %s59
      %p71 = scmp.eq.s32.totalorder %s14, 1
      %p72 = por %p70, %p71
      %p74 = scmp.ne.s32.totalorder %s59, %s73
      %p75 = scmp.eq.s32.totalorder %s14, 0
      %p76 = por %p74, %p75
      %s77 = ssub.s32 %s15, %s27
      %p78 = scmp.eq.s32.totalorder %s77, 0
      %s80 = sadd.s32 %s79, 1
      %s81 = scalar_select %p78, %s79, %s80
      %p84 = pneg %p78
      %p85 = scmp.eq.s32.totalorder %s8, 1
      %p86 = por %p84, %p85
      %p87 = scmp.ne.s32.totalorder %s79, %s82
      %p88 = scmp.eq.s32.totalorder %s8, 0
      %p89 = por %p87, %p88
      %p90 = scmp.ne.s32.totalorder %s79, %s82
      %p91 = scmp.eq.s32.totalorder %s13, 1
      %p92 = por %p90, %p91
      %p93 = scmp.ne.s32.totalorder %s82, %s83
      %p94 = scmp.eq.s32.totalorder %s13, 0
      %p95 = por %p93, %p94
      %p96 = scmp.ne.s32.totalorder %s82, %s83
      %p97 = scmp.eq.s32.totalorder %s14, 1
      %p98 = por %p96, %p97
      %p100 = scmp.ne.s32.totalorder %s83, %s99
      %p101 = scmp.eq.s32.totalorder %s14, 0
      %p102 = por %p100, %p101
      %p103 = scmp.le.s32.totalorder 1, %s8
      %p104 = scmp.lt.s32.totalorder %s8, 3
      %p105 = pnand %p103, %p104
      %p106 = pneg %p105
      // Predicated region
      $region9: #{_lambda_.1} parent=5 // pred_check
        _
      $region10: #{_lambda_.1} parent=5 // pred_check_branch
        %108 = sbr.rel (%p105) target = $region12
      $region11: #{_lambda_.1} parent=5 // pred_region
        %s109 = ssub.s32 %s8, 1
        // Predicated region
        $region13: #{_lambda_.1} parent=11 // pred_check
          %p110 = pneg %p69
        $region14: #{_lambda_.1} parent=11 // pred_check_branch
          %112 = sbr.rel (%p110) target = $region16
        $region15: #{_lambda_.1} parent=11 // pred_region
          _
        $region16: #{_lambda_.1} parent=11 // pred_fallthru
          _
      $region12: #{_lambda_.1} parent=5 // pred_fallthru
        _
      %p113 = scmp.lt.s32.totalorder %s8, 2
      // Predicated region
      $region17: #{_lambda_.1} parent=5 // pred_check
        %p114 = pneg %p113
      $region18: #{_lambda_.1} parent=5 // pred_check_branch
        %116 = sbr.rel (%p114) target = $region20
      $region19: #{_lambda_.1} parent=5 // pred_region
        // Predicated region
        $region21: #{_lambda_.1} parent=19 // pred_check
          %p117 = pneg %p42
        $region22: #{_lambda_.1} parent=19 // pred_check_branch
          %119 = sbr.rel (%p117) target = $region24
        $region23: #{_lambda_.1} parent=19 // pred_region
          %s120 = sand.u32 %s32, 1
          %s121 = sand.u32 %s32, 1
          %s122 = smul.addr %s121, 32
          %s123 = scalar_lea.vmem [#allocation2], %s122
          %s124 = smul.u32 2, %s15
          %s125 = smul.u32 4, %s16
          %s126 = smul.addr %s124, 8
          %s127 = sadd.s32 %s125, %s126
          %s128 = smul.addr %s127, 4
          %s129 = scalar_lea.vmem %s0, %s128
          // Predicated region
          $region25: #{_lambda_.1} parent=23 // pred_check
            _
          $region26: #{_lambda_.1} parent=23 // pred_check_branch
            %131 = sbr.rel (0) target = $region28
          $region27: #{_lambda_.1} parent=23 // pred_region
            // Predicated region
            $region29: #{_lambda_.1} parent=27 // pred_check
              _
            $region30: #{_lambda_.1} parent=27 // pred_check_branch
              %133 = sbr.rel target = $region32
            $region31: #{_lambda_.1} parent=27 // pred_region
              // Predicated region
              $region44: #{_lambda_.1} parent=31 // pred_check
                _
              $region45: #{_lambda_.1} parent=31 // pred_check_branch
                %163 = sbr.rel (0) target = $region47
              $region46: #{_lambda_.1} parent=31 // pred_region
                loop: start=0, step=1, limit=1
                $region48: #{_lambda_.1} parent=46 // loop_pre_header
                  _
                $region49: #{_lambda_.1} parent=46 // loop_header
                  %s165 = sphi 0, %s169
                  %p166 = scmp.ge.s32.totalorder %s165, 1
                  %s170 = sphi %s129, %s129
                  %s171 = sphi %s123, %s123
                $region50: #{_lambda_.1} parent=46 // loop_header_branch
                  %168 = sbr.rel (%p166) target = $region54
                $region51: #{_lambda_.1} parent=46 // loop_body
                  _
                $region52: #{_lambda_.1} parent=46 // loop_footer
                  %s169 = sadd.s32 1, %s165
                $region53: #{_lambda_.1} parent=46 // loop_footer_branch
                  %164 = sbr.rel target = $region49
                $region54: #{_lambda_.1} parent=46 // loop_exit
                  _
                %s173 = ssub.s32 16, 1
                loop: start=0, step=1, limit=1
                $region55: #{_lambda_.1} parent=46 // loop_pre_header
                  _
                $region56: #{_lambda_.1} parent=46 // loop_header
                  %s175 = sphi 0, %s179
                  %p176 = scmp.ge.s32.totalorder %s175, 1
                  %s180 = sphi %s129, %s129
                  %s181 = sphi %s123, %s123
                $region57: #{_lambda_.1} parent=46 // loop_header_branch
                  %178 = sbr.rel (%p176) target = $region61
                $region58: #{_lambda_.1} parent=46 // loop_body
                  %v182 = vld [vmem:[%s180] sm:%s173]
                  %183 = vst [vmem:[%s181] sm:%s173] %v182
                  %v184 = vld [vmem:[%s180 + $0x4] sm:%s173]
                  %185 = vst [vmem:[%s181 + $0x4] sm:%s173] %v184
                  %v186 = vld [vmem:[%s180 + $0x8] sm:%s173]
                  %187 = vst [vmem:[%s181 + $0x8] sm:%s173] %v186
                  %v188 = vld [vmem:[%s180 + $0xc] sm:%s173]
                  %189 = vst [vmem:[%s181 + $0xc] sm:%s173] %v188
                  %v190 = vld [vmem:[%s180 + $0x20] sm:%s173]
                  %191 = vst [vmem:[%s181 + $0x10] sm:%s173] %v190
                  %v192 = vld [vmem:[%s180 + $0x24] sm:%s173]
                  %193 = vst [vmem:[%s181 + $0x14] sm:%s173] %v192
                  %v194 = vld [vmem:[%s180 + $0x28] sm:%s173]
                  %195 = vst [vmem:[%s181 + $0x18] sm:%s173] %v194
                  %v196 = vld [vmem:[%s180 + $0x2c] sm:%s173]
                  %197 = vst [vmem:[%s181 + $0x1c] sm:%s173] %v196
                $region59: #{_lambda_.1} parent=46 // loop_footer
                  %s179 = sadd.s32 1, %s175
                $region60: #{_lambda_.1} parent=46 // loop_footer_branch
                  %174 = sbr.rel target = $region56
                $region61: #{_lambda_.1} parent=46 // loop_exit
                  _
              $region47: #{_lambda_.1} parent=31 // pred_fallthru
                _
            $region32: #{_lambda_.1} parent=27 // pred_fallthru
              _
            // Predicated region
            $region33: #{_lambda_.1} parent=27 // pred_check
              _
            $region34: #{_lambda_.1} parent=27 // pred_check_branch
              %135 = sbr.rel (0) target = $region36
            $region35: #{_lambda_.1} parent=27 // pred_region
              %s137 = ssub.s32 16, 1
              loop: start=0, step=1, limit=1
              $region37: #{_lambda_.1} parent=35 // loop_pre_header
                _
              $region38: #{_lambda_.1} parent=35 // loop_header
                %s139 = sphi 0, %s143
                %p140 = scmp.ge.s32.totalorder %s139, 1
                %s144 = sphi %s129, %s129
                %s145 = sphi %s123, %s123
              $region39: #{_lambda_.1} parent=35 // loop_header_branch
                %142 = sbr.rel (%p140) target = $region43
              $region40: #{_lambda_.1} parent=35 // loop_body
                %v146 = vld [vmem:[%s144] sm:%s137]
                %147 = vst [vmem:[%s145] sm:%s137] %v146
                %v148 = vld [vmem:[%s144 + $0x4] sm:%s137]
                %149 = vst [vmem:[%s145 + $0x4] sm:%s137] %v148
                %v150 = vld [vmem:[%s144 + $0x8] sm:%s137]
                %151 = vst [vmem:[%s145 + $0x8] sm:%s137] %v150
                %v152 = vld [vmem:[%s144 + $0xc] sm:%s137]
                %153 = vst [vmem:[%s145 + $0xc] sm:%s137] %v152
                %v154 = vld [vmem:[%s144 + $0x20] sm:%s137]
                %155 = vst [vmem:[%s145 + $0x10] sm:%s137] %v154
                %v156 = vld [vmem:[%s144 + $0x24] sm:%s137]
                %157 = vst [vmem:[%s145 + $0x14] sm:%s137] %v156
                %v158 = vld [vmem:[%s144 + $0x28] sm:%s137]
                %159 = vst [vmem:[%s145 + $0x18] sm:%s137] %v158
                %v160 = vld [vmem:[%s144 + $0x2c] sm:%s137]
                %161 = vst [vmem:[%s145 + $0x1c] sm:%s137] %v160
              $region41: #{_lambda_.1} parent=35 // loop_footer
                %s143 = sadd.s32 1, %s139
              $region42: #{_lambda_.1} parent=35 // loop_footer_branch
                %138 = sbr.rel target = $region38
              $region43: #{_lambda_.1} parent=35 // loop_exit
                _
            $region36: #{_lambda_.1} parent=27 // pred_fallthru
              _
          $region28: #{_lambda_.1} parent=23 // pred_fallthru
            _
          %198 = vnop
        $region24: #{_lambda_.1} parent=19 // pred_fallthru
          _
      $region20: #{_lambda_.1} parent=5 // pred_fallthru
        _
      %p199 = scmp.le.s32.totalorder 1, %s8
      %p200 = scmp.lt.s32.totalorder %s8, 3
      %p201 = pnand %p199, %p200
      %p202 = pneg %p201
      // Predicated region
      $region62: #{_lambda_.1} parent=5 // pred_check
        _
      $region63: #{_lambda_.1} parent=5 // pred_check_branch
        %204 = sbr.rel (%p201) target = $region65
      $region64: #{_lambda_.1} parent=5 // pred_region
        %s205 = ssub.s32 %s8, 1
        %s206 = sand.u32 %s35, 1
        %s207 = sand.u32 %s35, 1
        %s208 = smul.addr %s207, 32
        %s209 = scalar_lea.vmem [#allocation2], %s208
        // Predicated region
        $region66: #{_lambda_.1} parent=64 // pred_check
          %p210 = pneg %p48
        $region67: #{_lambda_.1} parent=64 // pred_check_branch
          %212 = sbr.rel (%p210) target = $region69
        $region68: #{_lambda_.1} parent=64 // pred_region
          _
        $region69: #{_lambda_.1} parent=64 // pred_fallthru
          _
        %s213 = sand.u32 %s35, 1
        %s214 = sand.u32 %s35, 1
        %s215 = smul.addr %s214, 32
        %s216 = scalar_lea.vmem [#allocation2], %s215
        %p217 = pneg %p48
        %p218 = pneg %p45
        %p219 = pneg %p69
        %p220 = pneg %p66
        %p221 = pneg %p95
        %p222 = pneg %p92
        %p223 = scmp.lt.s32.totalorder %s17, 0
        %s224 = scalar_select %p223, %s17, 0
        %s225 = smul.addr %s224, 2
        %s226 = scalar_lea.vmem %s2, %s225
        %s227 = smul.u32 2, %s17
        %s228 = smul.u32 4, %s18
        %p229 = scmp.lt.s32.totalorder %s17, 0
        %s230 = scalar_select %p229, %s17, 0
        %s231 = smul.addr %s230, 2
        %s232 = scalar_lea.vmem %s2, %s231
        %p234 = scmp.eq.s32.totalorder %s18, 0
        // Predicated region
        $region70: #{_lambda_.1} parent=64 // pred_check
          %p235 = pneg %p234
        $region71: #{_lambda_.1} parent=64 // pred_check_branch
          %237 = sbr.rel (%p235) target = $region73
        $region72: #{_lambda_.1} parent=64 // pred_region
          %238 = vst [vmem:[%s232] sm:$0x3] -inf
        $region73: #{_lambda_.1} parent=64 // pred_fallthru
          _
        %v239 = vld [vmem:[%s1] sm:$0xff]
        %v240 = vld [vmem:[%s1 + $0x8] sm:$0xff]
        %v241 = vld [vmem:[%s1 + $0x10] sm:$0xff]
        %v242 = vld [vmem:[%s1 + $0x18] sm:$0xff]
        %v243 = vld [vmem:[%s1 + $0x20] sm:$0xff]
        %v244 = vld [vmem:[%s1 + $0x28] sm:$0xff]
        %v245 = vld [vmem:[%s1 + $0x30] sm:$0xff]
        %v246 = vld [vmem:[%s1 + $0x38] sm:$0xff]
        %v247 = vld [vmem:[%s1 + $0x40] sm:$0xff]
        %v248 = vld [vmem:[%s1 + $0x48] sm:$0xff]
        %v249 = vld [vmem:[%s1 + $0x50] sm:$0xff]
        %v250 = vld [vmem:[%s1 + $0x58] sm:$0xff]
        %v251 = vld [vmem:[%s1 + $0x60] sm:$0xff]
        %v252 = vld [vmem:[%s1 + $0x68] sm:$0xff]
        %v253 = vld [vmem:[%s1 + $0x70] sm:$0xff]
        %v254 = vld [vmem:[%s1 + $0x78] sm:$0xff]
        %v255 = vld [vmem:[%s1 + $0x80] sm:$0xff]
        %v256 = vld [vmem:[%s1 + $0x88] sm:$0xff]
        %v257 = vld [vmem:[%s1 + $0x90] sm:$0xff]
        %v258 = vld [vmem:[%s1 + $0x98] sm:$0xff]
        %v259 = vld [vmem:[%s1 + $0xa0] sm:$0xff]
        %v260 = vld [vmem:[%s1 + $0xa8] sm:$0xff]
        %v261 = vld [vmem:[%s1 + $0xb0] sm:$0xff]
        %v262 = vld [vmem:[%s1 + $0xb8] sm:$0xff]
        %v263 = vld [vmem:[%s1 + $0xc0] sm:$0xff]
        %v264 = vld [vmem:[%s1 + $0xc8] sm:$0xff]
        %v265 = vld [vmem:[%s1 + $0xd0] sm:$0xff]
        %v266 = vld [vmem:[%s1 + $0xd8] sm:$0xff]
        %v267 = vld [vmem:[%s1 + $0xe0] sm:$0xff]
        %v268 = vld [vmem:[%s1 + $0xe8] sm:$0xff]
        %v269 = vld [vmem:[%s1 + $0xf0] sm:$0xff]
        %v270 = vld [vmem:[%s1 + $0xf8] sm:$0xff]
        %v271 = vld [vmem:[%s232] sm:$0x3]
        %v272 = vld [vmem:[%s209] sm:$0xf]
        %v273 = vld [vmem:[%s209 + $0x4] sm:$0xf]
        %v274 = vld [vmem:[%s209 + $0x8] sm:$0xf]
        %v275 = vld [vmem:[%s209 + $0xc] sm:$0xf]
        %v276 = vld [vmem:[%s209 + $0x10] sm:$0xf]
        %v277 = vld [vmem:[%s209 + $0x14] sm:$0xf]
        %v278 = vld [vmem:[%s209 + $0x18] sm:$0xf]
        %v279 = vld [vmem:[%s209 + $0x1c] sm:$0xf]
        %v288 = vunpack.c.l.b16 %v272
        %v289 = vunpack.c.l.b16 %v273
        %v290 = vunpack.c.l.b16 %v274
        %v291 = vunpack.c.l.b16 %v275
        %v292 = vunpack.c.l.b16 %v276
        %v293 = vunpack.c.l.b16 %v277
        %v294 = vunpack.c.l.b16 %v278
        %v295 = vunpack.c.l.b16 %v279
        %v296 = vpack.c.b16 %v289, %v288
        %v297 = vpack.c.b16 %v291, %v290
        %v298 = vpack.c.b16 %v293, %v292
        %v299 = vpack.c.b16 %v295, %v294
        %v336 = vunpack.c.l.b16 %v239
        %v337 = vunpack.c.h.b16 %v239
        %v338 = vunpack.c.l.b16 %v240
        %v339 = vunpack.c.h.b16 %v240
        %v340 = vunpack.c.l.b16 %v241
        %v341 = vunpack.c.h.b16 %v241
        %v342 = vunpack.c.l.b16 %v242
        %v343 = vunpack.c.h.b16 %v242
        %v344 = vunpack.c.l.b16 %v243
        %v345 = vunpack.c.h.b16 %v243
        %v346 = vunpack.c.l.b16 %v244
        %v347 = vunpack.c.h.b16 %v244
        %v348 = vunpack.c.l.b16 %v245
        %v349 = vunpack.c.h.b16 %v245
        %v350 = vunpack.c.l.b16 %v246
        %v351 = vunpack.c.h.b16 %v246
        %v352 = vunpack.c.l.b16 %v247
        %v353 = vunpack.c.h.b16 %v247
        %v354 = vunpack.c.l.b16 %v248
        %v355 = vunpack.c.h.b16 %v248
        %v356 = vunpack.c.l.b16 %v249
        %v357 = vunpack.c.h.b16 %v249
        %v358 = vunpack.c.l.b16 %v250
        %v359 = vunpack.c.h.b16 %v250
        %v360 = vunpack.c.l.b16 %v251
        %v361 = vunpack.c.h.b16 %v251
        %v362 = vunpack.c.l.b16 %v252
        %v363 = vunpack.c.h.b16 %v252
        %v364 = vunpack.c.l.b16 %v253
        %v365 = vunpack.c.h.b16 %v253
        %v366 = vunpack.c.l.b16 %v254
        %v367 = vunpack.c.h.b16 %v254
        %v368 = vunpack.c.l.b16 %v255
        %v369 = vunpack.c.h.b16 %v255
        %v370 = vunpack.c.l.b16 %v256
        %v371 = vunpack.c.h.b16 %v256
        %v372 = vunpack.c.l.b16 %v257
        %v373 = vunpack.c.h.b16 %v257
        %v374 = vunpack.c.l.b16 %v258
        %v375 = vunpack.c.h.b16 %v258
        %v376 = vunpack.c.l.b16 %v259
        %v377 = vunpack.c.h.b16 %v259
        %v378 = vunpack.c.l.b16 %v260
        %v379 = vunpack.c.h.b16 %v260
        %v380 = vunpack.c.l.b16 %v261
        %v381 = vunpack.c.h.b16 %v261
        %v382 = vunpack.c.l.b16 %v262
        %v383 = vunpack.c.h.b16 %v262
        %v384 = vunpack.c.l.b16 %v263
        %v385 = vunpack.c.h.b16 %v263
        %v386 = vunpack.c.l.b16 %v264
        %v387 = vunpack.c.h.b16 %v264
        %v388 = vunpack.c.l.b16 %v265
        %v389 = vunpack.c.h.b16 %v265
        %v390 = vunpack.c.l.b16 %v266
        %v391 = vunpack.c.h.b16 %v266
        %v392 = vunpack.c.l.b16 %v267
        %v393 = vunpack.c.h.b16 %v267
        %v394 = vunpack.c.l.b16 %v268
        %v395 = vunpack.c.h.b16 %v268
        %v396 = vunpack.c.l.b16 %v269
        %v397 = vunpack.c.h.b16 %v269
        %v398 = vunpack.c.l.b16 %v270
        %v399 = vunpack.c.h.b16 %v270
        %v400 = vpack.c.b16 %v340, %v336
        %v401 = vpack.c.b16 %v341, %v337
        %v402 = vpack.c.b16 %v342, %v338
        %v403 = vpack.c.b16 %v343, %v339
        %v404 = vpack.c.b16 %v348, %v344
        %v405 = vpack.c.b16 %v349, %v345
        %v406 = vpack.c.b16 %v350, %v346
        %v407 = vpack.c.b16 %v351, %v347
        %v408 = vpack.c.b16 %v356, %v352
        %v409 = vpack.c.b16 %v357, %v353
        %v410 = vpack.c.b16 %v358, %v354
        %v411 = vpack.c.b16 %v359, %v355
        %v412 = vpack.c.b16 %v364, %v360
        %v413 = vpack.c.b16 %v365, %v361
        %v414 = vpack.c.b16 %v366, %v362
        %v415 = vpack.c.b16 %v367, %v363
        %v416 = vpack.c.b16 %v372, %v368
        %v417 = vpack.c.b16 %v373, %v369
        %v418 = vpack.c.b16 %v374, %v370
        %v419 = vpack.c.b16 %v375, %v371
        %v420 = vpack.c.b16 %v380, %v376
        %v421 = vpack.c.b16 %v381, %v377
        %v422 = vpack.c.b16 %v382, %v378
        %v423 = vpack.c.b16 %v383, %v379
        %v424 = vpack.c.b16 %v388, %v384
        %v425 = vpack.c.b16 %v389, %v385
        %v426 = vpack.c.b16 %v390, %v386
        %v427 = vpack.c.b16 %v391, %v387
        %v428 = vpack.c.b16 %v396, %v392
        %v429 = vpack.c.b16 %v397, %v393
        %v430 = vpack.c.b16 %v398, %v394
        %v431 = vpack.c.b16 %v399, %v395
        %464 = vmatprep.subr.bf16.mxu0 %v429
        %465 = vmatpush1.bf16.msra.mxu0 %v428
        %466 = vmatprep.subr.bf16.mxu0 %v425
        %467 = vmatpush1.bf16.msra.mxu0 %v424
        %468 = vmatprep.subr.bf16.mxu0 %v421
        %469 = vmatpush1.bf16.msra.mxu0 %v420
        %470 = vmatprep.subr.bf16.mxu0 %v417
        %471 = vmatpush1.bf16.msra.mxu0 %v416
        %472 = vmatprep.subr.bf16.mxu0 %v413
        %473 = vmatpush1.bf16.msra.mxu0 %v412
        %474 = vmatprep.subr.bf16.mxu0 %v409
        %475 = vmatpush1.bf16.msra.mxu0 %v408
        %476 = vmatprep.subr.bf16.mxu0 %v405
        %477 = vmatpush1.bf16.msra.mxu0 %v404
        %478 = vmatprep.subr.bf16.mxu0 %v401
        %479 = vmatpush1.bf16.msra.mxu0 %v400
        %480 = vmatprep.subr.bf16.mxu0 0
        %481 = vmatpush2.bf16.msra.mxu0 0
        %482 = vmatprep.subr.bf16.mxu0 0
        %483 = vmatpush2.bf16.msra.mxu0 0
        %484 = vmatprep.subr.bf16.mxu0 0
        %485 = vmatpush2.bf16.msra.mxu0 0
        %486 = vmatprep.subr.bf16.mxu0 0
        %487 = vmatpush2.bf16.msra.mxu0 0
        %488 = vmatprep.subr.bf16.mxu0 0
        %489 = vmatpush2.bf16.msra.mxu0 0
        %490 = vmatprep.subr.bf16.mxu0 0
        %491 = vmatpush2.bf16.msra.mxu0 0
        %492 = vmatprep.subr.bf16.mxu0 0
        %493 = vmatpush2.bf16.msra.mxu0 0
        %494 = vmatprep.subr.bf16.mxu0 0
        %495 = vmatpush2.bf16.msra.mxu0 0
        %496 = vmatprep.mubr.bf16.mxu0 0
        %497 = vmatmul.mubr.bf16.gmra.mxu0 %v296
        %v498 = vpop.f32.mrf.mxu0
        %v499 = vadd.f32 0.0, %v498
        %v500 = vpop.f32.mrf.mxu0
        %v501 = vadd.f32 0.0, %v500
        %v502 = vpop.f32.mrf.mxu0
        %v503 = vadd.f32 0.0, %v502
        %v504 = vpop.f32.mrf.mxu0
        %v505 = vadd.f32 0.0, %v504
        %506 = vmatprep.mubr.bf16.mxu0 0
        %507 = vmatmul.mubr.bf16.gmra.mxu0 %v297
        %v508 = vpop.f32.mrf.mxu0
        %v509 = vadd.f32 0.0, %v508
        %v510 = vpop.f32.mrf.mxu0
        %v511 = vadd.f32 0.0, %v510
        %v512 = vpop.f32.mrf.mxu0
        %v513 = vadd.f32 0.0, %v512
        %v514 = vpop.f32.mrf.mxu0
        %v515 = vadd.f32 0.0, %v514
        %516 = vmatprep.mubr.bf16.mxu0 0
        %517 = vmatmul.mubr.bf16.gmra.mxu0 %v298
        %v518 = vpop.f32.mrf.mxu0
        %v519 = vadd.f32 0.0, %v518
        %v520 = vpop.f32.mrf.mxu0
        %v521 = vadd.f32 0.0, %v520
        %v522 = vpop.f32.mrf.mxu0
        %v523 = vadd.f32 0.0, %v522
        %v524 = vpop.f32.mrf.mxu0
        %v525 = vadd.f32 0.0, %v524
        %526 = vmatprep.mubr.bf16.mxu0 0
        %527 = vmatmul.mubr.bf16.gmra.mxu0 %v299
        %v528 = vpop.f32.mrf.mxu0
        %v529 = vadd.f32 0.0, %v528
        %v530 = vpop.f32.mrf.mxu0
        %v531 = vadd.f32 0.0, %v530
        %v532 = vpop.f32.mrf.mxu0
        %v533 = vadd.f32 0.0, %v532
        %v534 = vpop.f32.mrf.mxu0
        %v535 = vadd.f32 0.0, %v534
        %536 = vdwg.mxu0
        %537 = vmatprep.subr.bf16.mxu0 %v431
        %538 = vmatpush1.bf16.msra.mxu0 %v430
        %539 = vmatprep.subr.bf16.mxu0 %v427
        %540 = vmatpush1.bf16.msra.mxu0 %v426
        %541 = vmatprep.subr.bf16.mxu0 %v423
        %542 = vmatpush1.bf16.msra.mxu0 %v422
        %543 = vmatprep.subr.bf16.mxu0 %v419
        %544 = vmatpush1.bf16.msra.mxu0 %v418
        %545 = vmatprep.subr.bf16.mxu0 %v415
        %546 = vmatpush1.bf16.msra.mxu0 %v414
        %547 = vmatprep.subr.bf16.mxu0 %v411
        %548 = vmatpush1.bf16.msra.mxu0 %v410
        %549 = vmatprep.subr.bf16.mxu0 %v407
        %550 = vmatpush1.bf16.msra.mxu0 %v406
        %551 = vmatprep.subr.bf16.mxu0 %v403
        %552 = vmatpush1.bf16.msra.mxu0 %v402
        %553 = vmatprep.subr.bf16.mxu0 0
        %554 = vmatpush2.bf16.msra.mxu0 0
        %555 = vmatprep.subr.bf16.mxu0 0
        %556 = vmatpush2.bf16.msra.mxu0 0
        %557 = vmatprep.subr.bf16.mxu0 0
        %558 = vmatpush2.bf16.msra.mxu0 0
        %559 = vmatprep.subr.bf16.mxu0 0
        %560 = vmatpush2.bf16.msra.mxu0 0
        %561 = vmatprep.subr.bf16.mxu0 0
        %562 = vmatpush2.bf16.msra.mxu0 0
        %563 = vmatprep.subr.bf16.mxu0 0
        %564 = vmatpush2.bf16.msra.mxu0 0
        %565 = vmatprep.subr.bf16.mxu0 0
        %566 = vmatpush2.bf16.msra.mxu0 0
        %567 = vmatprep.subr.bf16.mxu0 0
        %568 = vmatpush2.bf16.msra.mxu0 0
        %569 = vmatprep.mubr.bf16.mxu0 0
        %570 = vmatmul.mubr.bf16.gmra.mxu0 %v296
        %v571 = vpop.f32.mrf.mxu0
        %v572 = vadd.f32 0.0, %v571
        %v573 = vpop.f32.mrf.mxu0
        %v574 = vadd.f32 0.0, %v573
        %v575 = vpop.f32.mrf.mxu0
        %v576 = vadd.f32 0.0, %v575
        %v577 = vpop.f32.mrf.mxu0
        %v578 = vadd.f32 0.0, %v577
        %579 = vmatprep.mubr.bf16.mxu0 0
        %580 = vmatmul.mubr.bf16.gmra.mxu0 %v297
        %v581 = vpop.f32.mrf.mxu0
        %v582 = vadd.f32 0.0, %v581
        %v583 = vpop.f32.mrf.mxu0
        %v584 = vadd.f32 0.0, %v583
        %v585 = vpop.f32.mrf.mxu0
        %v586 = vadd.f32 0.0, %v585
        %v587 = vpop.f32.mrf.mxu0
        %v588 = vadd.f32 0.0, %v587
        %589 = vmatprep.mubr.bf16.mxu0 0
        %590 = vmatmul.mubr.bf16.gmra.mxu0 %v298
        %v591 = vpop.f32.mrf.mxu0
        %v592 = vadd.f32 0.0, %v591
        %v593 = vpop.f32.mrf.mxu0
        %v594 = vadd.f32 0.0, %v593
        %v595 = vpop.f32.mrf.mxu0
        %v596 = vadd.f32 0.0, %v595
        %v597 = vpop.f32.mrf.mxu0
        %v598 = vadd.f32 0.0, %v597
        %599 = vmatprep.mubr.bf16.mxu0 0
        %600 = vmatmul.mubr.bf16.gmra.mxu0 %v299
        %v601 = vpop.f32.mrf.mxu0
        %v602 = vadd.f32 0.0, %v601
        %v603 = vpop.f32.mrf.mxu0
        %v604 = vadd.f32 0.0, %v603
        %v605 = vpop.f32.mrf.mxu0
        %v606 = vadd.f32 0.0, %v605
        %v607 = vpop.f32.mrf.mxu0
        %v608 = vadd.f32 0.0, %v607
        %609 = vdwg.mxu0
        %v610 = vmax.f32 %v499, %v501
        %v611 = vmax.f32 %v503, %v505
        %v612 = vmax.f32 %v509, %v511
        %v613 = vmax.f32 %v513, %v515
        %v614 = vmax.f32 %v519, %v521
        %v615 = vmax.f32 %v523, %v525
        %v616 = vmax.f32 %v529, %v531
        %v617 = vmax.f32 %v533, %v535
        %v618 = vmax.f32 %v610, %v572
        %v619 = vmax.f32 %v611, %v576
        %v620 = vmax.f32 %v612, %v582
        %v621 = vmax.f32 %v613, %v586
        %v622 = vmax.f32 %v614, %v592
        %v623 = vmax.f32 %v615, %v596
        %v624 = vmax.f32 %v616, %v602
        %v625 = vmax.f32 %v617, %v606
        %v626 = vmax.f32 %v618, %v574
        %v627 = vmax.f32 %v619, %v578
        %v628 = vmax.f32 %v620, %v584
        %v629 = vmax.f32 %v621, %v588
        %v630 = vmax.f32 %v622, %v594
        %v631 = vmax.f32 %v623, %v598
        %v632 = vmax.f32 %v624, %v604
        %v633 = vmax.f32 %v625, %v608
        %v634 = vmax.f32 %v626, %v628
        %v635 = vmax.f32 %v627, %v629
        %v636 = vmax.f32 %v634, %v635
        %v637 = vrot.slane %v636, 4
        %v638 = vmax.f32 %v636, %v637
        %v639 = vrot.slane %v638, 2
        %v640 = vmax.f32 %v638, %v639
        %v641 = vrot.slane %v640, 1
        %v642 = vmax.f32 %v640, %v641
        %v643 = vmax.f32 %v630, %v632
        %v644 = vmax.f32 %v631, %v633
        %v645 = vmax.f32 %v643, %v644
        %v646 = vrot.slane %v645, 4
        %v647 = vmax.f32 %v645, %v646
        %v648 = vrot.slane %v647, 2
        %v649 = vmax.f32 %v647, %v648
        %v650 = vrot.slane %v649, 1
        %v651 = vmax.f32 %v649, %v650
        %vm654 = vcmask 1041409
        %v655 = vsel %vm654, %v651, %v642
        %v657 = vmax.f32 %v271, %v655
        %658 = vst [vmem:[%s232] sm:$0x3] %v657
        %p659 = scmp.lt.s32.totalorder %s17, 0
        %s660 = scalar_select %p659, %s17, 0
        %s661 = smul.addr %s660, 2
        %s662 = scalar_lea.vmem %s2, %s661
        // Predicated region
        $region74: #{_lambda_.1} parent=64 // pred_check
          %p663 = pneg %p92
        $region75: #{_lambda_.1} parent=64 // pred_check_branch
          %665 = sbr.rel (%p663) target = $region77
        $region76: #{_lambda_.1} parent=64 // pred_region
          _
        $region77: #{_lambda_.1} parent=64 // pred_fallthru
          _
        // Predicated region
        $region78: #{_lambda_.1} parent=64 // pred_check
          %p666 = pneg %p92
        $region79: #{_lambda_.1} parent=64 // pred_check_branch
          %668 = sbr.rel (%p666) target = $region81
        $region80: #{_lambda_.1} parent=64 // pred_region
          %p669 = scmp.lt.s32.totalorder %s17, 0
          %s670 = scalar_select %p669, %s17, 0
          %s671 = smul.addr %s670, 2
          %s672 = scalar_lea.vmem %s2, %s671
        $region81: #{_lambda_.1} parent=64 // pred_fallthru
          _
      $region65: #{_lambda_.1} parent=5 // pred_fallthru
        _
      %p673 = scmp.le.s32.totalorder 2, %s8
      // Predicated region
      $region82: #{_lambda_.1} parent=5 // pred_check
        %p674 = pneg %p673
      $region83: #{_lambda_.1} parent=5 // pred_check_branch
        %676 = sbr.rel (%p674) target = $region85
      $region84: #{_lambda_.1} parent=5 // pred_region
        %s677 = ssub.s32 %s8, 2
      $region85: #{_lambda_.1} parent=5 // pred_fallthru
        _
    $region6: #{_lambda_.1} parent=1 // loop_footer
      %s12 = sadd.s32 1, %s8
    $region7: #{_lambda_.1} parent=1 // loop_footer_branch
      %7 = sbr.rel target = $region3
    $region8: #{_lambda_.1} parent=1 // loop_exit
      _

</llo_original>
